<compile_context>
chip_gen: v5e
topology: v5e:2x2
jax: 0.10.0
libtpu: 0.0.40
codegen_flags: <defaults>
</compile_context>

<pallas_src>
import jax
import jax.numpy as jnp
from jax.experimental import pallas as pl
from jax.experimental.pallas import tpu as pltpu

_LANE = 128


def _round_up(x, m):
    return (x + m - 1) // m * m


def _cdiv(a, b):
    return -(-a // b)


def _sublane(dtype):
    # full-vreg sublane packing: 8 rows for 4-byte, 16 for 2-byte, 32 for 1-byte
    return {1: 32, 2: 16, 4: 8}.get(jnp.dtype(dtype).itemsize, 8)


def _chip_info():
    """Returns (num_tensorcores_per_chip, mxu_width, vmem_bytes_per_core)."""
    kind = ""
    try:
        kind = jax.devices()[0].device_kind.lower()
    except Exception:
        pass
    vmem = None
    try:
        vmem = int(pltpu.get_tpu_info().vmem_capacity_bytes)
    except Exception:
        vmem = None

    if "v5 lite" in kind or "v5e" in kind or "v5lite" in kind:
        ntc, mxu, default_vmem = 1, 128, 128 * 1024 * 1024
    elif "v6" in kind:
        ntc, mxu, default_vmem = 1, 256, 128 * 1024 * 1024
    elif "v7" in kind:
        ntc, mxu, default_vmem = 2, 256, 64 * 1024 * 1024
    else:
        # Unknown / older generation: conservative defaults.
        ntc, mxu, default_vmem = 1, 128, 32 * 1024 * 1024
    if vmem is None:
        vmem = default_vmem
    return ntc, mxu, vmem


# --------------------------------------------------------------------------
# Kernels
# --------------------------------------------------------------------------
def _mlp_kernel_resident(x_ref, w1_ref, b1_ref, w2_ref, b2_ref, o_ref):
    """Weights fully VMEM-resident: single pass, direct output write."""
    h = jnp.dot(x_ref[...], w1_ref[...], preferred_element_type=jnp.float32)
    h = jnp.maximum(h + b1_ref[...], 0.0)
    y = jnp.dot(h.astype(w2_ref.dtype), w2_ref[...],
                preferred_element_type=jnp.float32)
    o_ref[...] = (y + b2_ref[...]).astype(o_ref.dtype)


def _mlp_kernel_stream_acc_out(x_ref, w1_ref, b1_ref, w2_ref, b2_ref, o_ref):
    """Streamed hidden tiles, f32 output: accumulate straight into o_ref."""
    k = pl.program_id(1)
    h = jnp.dot(x_ref[...], w1_ref[...], preferred_element_type=jnp.float32)
    h = jnp.maximum(h + b1_ref[...], 0.0)
    part = jnp.dot(h.astype(w2_ref.dtype), w2_ref[...],
                   preferred_element_type=jnp.float32)

    @pl.when(k == 0)
    def _():
        o_ref[...] = part + b2_ref[...]

    @pl.when(k != 0)
    def _():
        o_ref[...] += part


def _mlp_kernel_stream_scratch(x_ref, w1_ref, b1_ref, w2_ref, b2_ref, o_ref,
                               acc_ref):
    """Streamed hidden tiles, non-f32 output: f32 scratch accumulator."""
    k = pl.program_id(1)

    @pl.when(k == 0)
    def _():
        acc_ref[...] = jnp.zeros_like(acc_ref)

    h = jnp.dot(x_ref[...], w1_ref[...], preferred_element_type=jnp.float32)
    h = jnp.maximum(h + b1_ref[...], 0.0)
    acc_ref[...] += jnp.dot(h.astype(w2_ref.dtype), w2_ref[...],
                            preferred_element_type=jnp.float32)

    @pl.when(k == pl.num_programs(1) - 1)
    def _():
        o_ref[...] = (acc_ref[...] + b2_ref[...]).astype(o_ref.dtype)


# --------------------------------------------------------------------------
# One-time parameter preparation (hoisted off the forward path)
# --------------------------------------------------------------------------
def prepare_linear_int(w1, b1, w2, b2, *, compute_dtype=jnp.float32):
    """Pads/casts the MLP parameters once.

    w1: [D, H], b1: [H], w2: [H, O], b2: [O]
    (weights stored input-major, i.e. transposed vs. torch.nn.Linear.weight).
    """
    D, H = w1.shape
    H2, O = w2.shape
    assert H2 == H, "w1/w2 hidden dims must match"

    ntc, mxu, vmem = _chip_info()
    compute_dtype = jnp.dtype(compute_dtype)
    itemsize = compute_dtype.itemsize

    def feat_pad(d):
        # lane-dense always; MXU-width granular (256 on v6e/v7x) once the dim
        # exceeds one lane group, so big matmuls fill the systolic array.
        align = mxu if d > _LANE else _LANE
        return _round_up(d, align)

    Dp, Hp, Op = feat_pad(D), feat_pad(H), feat_pad(O)

    # ---- VMEM budgeting (per generation) -----------------------------------
    vmem_limit = int(0.75 * vmem)        # what we ask Mosaic for
    budget = int(0.80 * vmem_limit)      # what our own tile plan may use
    weight_budget = budget // 2

    # Weights stay fully resident (fetched once, revisited every row tile) if
    # they fit double-buffered; otherwise stream hidden tiles of width th
    # (a multiple of the MXU width), padding Hp up to a multiple of th.
    resident_bytes = 2 * ((Dp * Hp + Hp * Op) * itemsize + (Hp + Op) * 4)
    if resident_bytes <= weight_budget:
        th = Hp
    else:
        per_col = 2 * (Dp + Op) * itemsize          # dbl-buffered W1 col + W2 row
        th = max(mxu, (weight_budget // max(per_col, 1)) // mxu * mxu)
        th = min(th, _round_up(Hp, mxu))
        Hp = _round_up(Hp, th)
    n_h = Hp // th

    f32 = jnp.float32
    w1_p = jnp.zeros((Dp, Hp), compute_dtype).at[:D, :H].set(w1.astype(compute_dtype))
    b1_p = jnp.zeros((1, Hp), f32).at[0, :H].set(b1.astype(f32))
    w2_p = jnp.zeros((Hp, Op), compute_dtype).at[:H, :O].set(w2.astype(compute_dtype))
    b2_p = jnp.zeros((1, Op), f32).at[0, :O].set(b2.astype(f32))

    return dict(
        w1=w1_p, b1=b1_p, w2=w2_p, b2=b2_p,
        D=D, H=H, O=O, Dp=Dp, Hp=Hp, Op=Op, th=th, n_h=n_h,
        compute_dtype=compute_dtype, itemsize=itemsize,
        ntc=ntc, mxu=mxu, vmem_limit=vmem_limit, budget=budget,
    )


# --------------------------------------------------------------------------
# Forward
# --------------------------------------------------------------------------
def linear_int_forward(x, params, *, tm=None):
    """y = relu(x @ W1 + b1) @ W2 + b2 using pre-padded params."""
    D, O = params["D"], params["O"]
    Dp, Hp, Op = params["Dp"], params["Hp"], params["Op"]
    th, n_h = params["th"], params["n_h"]
    compute_dtype = params["compute_dtype"]
    itemsize = params["itemsize"]
    ntc = params["ntc"]
    budget = params["budget"]
    vmem_limit = params["vmem_limit"]

    out_dtype = x.dtype
    out_itemsize = jnp.dtype(out_dtype).itemsize

    lead = x.shape[:-1]
    assert x.shape[-1] == D, "last dim of x must equal input_dim"
    x2 = x.reshape(-1, D)
    M = x2.shape[0]

    # ---- row-tile sizing (dtype-aware sublane; transients counted) ---------
    sub = max(_sublane(compute_dtype), _sublane(out_dtype))

    if n_h == 1:
        w_bytes = 2 * ((Dp * Hp + Hp * Op) * itemsize + (Hp + Op) * 4)
        use_scratch = False
    else:
        w_bytes = 2 * ((Dp * th + th * Op) * itemsize + th * 4) + 2 * Op * 4
        use_scratch = (out_dtype != jnp.float32)
    per_row = (2 * Dp * itemsize           # x tile, double-buffered
               + 2 * Op * out_itemsize     # out tile, double-buffered
               + th * 4                    # f32 h intermediate
               + th * itemsize             # cast copy of h feeding the 2nd dot
               + Op * 4                    # transient f32 result of the 2nd dot
               + (Op * 4 if use_scratch else 0))   # f32 accumulator scratch

    if tm is None:
        avail = max(budget - w_bytes, per_row * sub)
        tm = (avail // per_row) // sub * sub
        tm = min(tm, 2048 if n_h > 1 else 1024)
    tm = max(sub, (tm // sub) * sub)

    Msub = _round_up(M, sub)
    tm = min(tm, Msub)
    n_m = _cdiv(Msub, tm)
    if n_m == 1 and ntc >= 2 and Msub >= 2 * sub:
        n_m = 2                       # give each TensorCore a row tile (v7x)
    tm = _round_up(_cdiv(Msub, n_m), sub)   # balance the row tiles
    n_m = _cdiv(Msub, tm)
    Mp = n_m * tm

    # ---- pad / cast x only when actually needed -----------------------------
    if Mp == M and Dp == D and x2.dtype == compute_dtype:
        x_p = x2
    elif Mp == M and Dp == D:
        x_p = x2.astype(compute_dtype)
    else:
        x_p = jnp.zeros((Mp, Dp), compute_dtype).at[:M, :D].set(
            x2.astype(compute_dtype))

    weight_bytes = (Dp * Hp + Hp * Op) * itemsize + (Hp + Op) * 4
    cost = pl.CostEstimate(
        flops=int(2 * Mp * (Dp * Hp + Hp * Op)),
        transcendentals=0,
        bytes_accessed=int(Mp * Dp * itemsize
                           + weight_bytes * (n_m if n_h > 1 else 1)
                           + Mp * Op * out_itemsize),
    )

    if n_h == 1:
        out_p = pl.pallas_call(
            _mlp_kernel_resident,
            out_shape=jax.ShapeDtypeStruct((Mp, Op), out_dtype),
            grid_spec=pltpu.PrefetchScalarGridSpec(
                num_scalar_prefetch=0,
                grid=(n_m,),
                in_specs=[
                    pl.BlockSpec((tm, Dp), lambda i: (i, 0)),   # x row tile
                    pl.BlockSpec((Dp, Hp), lambda i: (0, 0)),   # W1 (resident)
                    pl.BlockSpec((1, Hp), lambda i: (0, 0)),    # b1
                    pl.BlockSpec((Hp, Op), lambda i: (0, 0)),   # W2 (resident)
                    pl.BlockSpec((1, Op), lambda i: (0, 0)),    # b2
                ],
                out_specs=pl.BlockSpec((tm, Op), lambda i: (i, 0)),
            ),
            compiler_params=pltpu.CompilerParams(
                dimension_semantics=("parallel",),
                vmem_limit_bytes=vmem_limit),
            cost_estimate=cost,
        )(x_p, params["w1"], params["b1"], params["w2"], params["b2"])
    else:
        kernel = (_mlp_kernel_stream_scratch if use_scratch
                  else _mlp_kernel_stream_acc_out)
        scratch = [pltpu.VMEM((tm, Op), jnp.float32)] if use_scratch else []
        out_p = pl.pallas_call(
            kernel,
            out_shape=jax.ShapeDtypeStruct((Mp, Op), out_dtype),
            grid_spec=pltpu.PrefetchScalarGridSpec(
                num_scalar_prefetch=0,
                grid=(n_m, n_h),
                in_specs=[
                    pl.BlockSpec((tm, Dp), lambda i, k: (i, 0)),   # x row tile
                    pl.BlockSpec((Dp, th), lambda i, k: (0, k)),   # W1 hidden tile
                    pl.BlockSpec((1, th), lambda i, k: (0, k)),    # b1 tile
                    pl.BlockSpec((th, Op), lambda i, k: (k, 0)),   # W2 hidden tile
                    pl.BlockSpec((1, Op), lambda i, k: (0, 0)),    # b2
                ],
                out_specs=pl.BlockSpec((tm, Op), lambda i, k: (i, 0)),
                scratch_shapes=scratch,
            ),
            compiler_params=pltpu.CompilerParams(
                dimension_semantics=("parallel", "arbitrary"),
                vmem_limit_bytes=vmem_limit),
            cost_estimate=cost,
        )(x_p, params["w1"], params["b1"], params["w2"], params["b2"])

    out = out_p if (Mp == M and Op == O) else out_p[:M, :O]
    return out.reshape(lead + (O,))


def reference_forward(x, w1, b1, w2, b2):
    h = jnp.maximum(x @ w1 + b1, 0.0)
    return h @ w2 + b2


if __name__ == "__main__":
    # Shapes implied by the module: x [batch, input_dim].
    batch, input_dim, hidden_dim, output_dim = 8, 32, 64, 16

    key = jax.random.PRNGKey(0)
    kx, kw1, kb1, kw2, kb2 = jax.random.split(key, 5)

    x = jax.random.normal(kx, (batch, input_dim), dtype=jnp.float32)

    # PyTorch nn.Linear-style uniform init, stored as [in, out] for the kernel.
    bound1 = 1.0 / (input_dim ** 0.5)
    w1 = jax.random.uniform(kw1, (input_dim, hidden_dim),
                            minval=-bound1, maxval=bound1, dtype=jnp.float32)
    b1 = jax.random.uniform(kb1, (hidden_dim,),
                            minval=-bound1, maxval=bound1, dtype=jnp.float32)
    bound2 = 1.0 / (hidden_dim ** 0.5)
    w2 = jax.random.uniform(kw2, (hidden_dim, output_dim),
                            minval=-bound2, maxval=bound2, dtype=jnp.float32)
    b2 = jax.random.uniform(kb2, (output_dim,),
                            minval=-bound2, maxval=bound2, dtype=jnp.float32)

    ref = reference_forward(x, w1, b1, w2, b2)

    # f32 path: pad/cast the weights once, then run the fused kernel.
    params_f32 = prepare_linear_int(w1, b1, w2, b2, compute_dtype=jnp.float32)
    out = jax.block_until_ready(linear_int_forward(x, params_f32))
    assert out.shape == (batch, output_dim)
    assert jnp.allclose(out, ref, atol=1e-5, rtol=1e-5), "f32 kernel mismatch"

    # bf16-compute / f32-accumulate path (MXU-friendly on v5e/v6e; bf16 is the
    # portable narrow dtype on v7x, whose MXU has no int8 mode).
    params_bf16 = prepare_linear_int(w1, b1, w2, b2, compute_dtype=jnp.bfloat16)
    out_bf16 = jax.block_until_ready(linear_int_forward(x, params_bf16))
    assert out_bf16.shape == (batch, output_dim)
    assert jnp.allclose(out_bf16, ref, atol=5e-2, rtol=5e-2), "bf16 kernel mismatch"

    print("KERNEL_OK")
</pallas_src>

<mosaic_0001>
module attributes {stable_mosaic.version = 11 : i64} {
  func.func @_mlp_kernel_resident(%arg0: i32, %arg1: memref<8x128xf32, #tpu.memory_space<vmem>>, %arg2: memref<128x128xf32, #tpu.memory_space<vmem>>, %arg3: memref<1x128xf32, #tpu.memory_space<vmem>>, %arg4: memref<128x128xf32, #tpu.memory_space<vmem>>, %arg5: memref<1x128xf32, #tpu.memory_space<vmem>>, %arg6: memref<8x128xf32, #tpu.memory_space<vmem>>) attributes {dimension_semantics = [#tpu.dimension_semantics<parallel>], iteration_bounds = array<i64: 1>, scalar_prefetch = 0 : i64, scratch_operands = 0 : i64, tpu.core_type = #tpu.core_type<tc>, window_params = [{transform_indices = @transform_0, window_bounds = array<i64: 8, 128>}, {pipeline_mode = #tpu.pipeline_mode<synchronous>, transform_indices = @transform_1, window_bounds = array<i64: 128, 128>}, {pipeline_mode = #tpu.pipeline_mode<synchronous>, transform_indices = @transform_2, window_bounds = array<i64: 1, 128>}, {pipeline_mode = #tpu.pipeline_mode<synchronous>, transform_indices = @transform_3, window_bounds = array<i64: 128, 128>}, {pipeline_mode = #tpu.pipeline_mode<synchronous>, transform_indices = @transform_4, window_bounds = array<i64: 1, 128>}, {transform_indices = @transform_5, window_bounds = array<i64: 8, 128>}]} {
    %c0 = arith.constant 0 : index
    %c0_0 = arith.constant 0 : index
    %0 = vector.load %arg1[%c0, %c0_0] : memref<8x128xf32, #tpu.memory_space<vmem>>, vector<8x128xf32>
    %c0_1 = arith.constant 0 : index
    %c0_2 = arith.constant 0 : index
    %1 = vector.load %arg2[%c0_1, %c0_2] : memref<128x128xf32, #tpu.memory_space<vmem>>, vector<128x128xf32>
    %cst = arith.constant dense<0.000000e+00> : vector<8x128xf32>
    %2 = tpu.matmul %0, %1, %cst {dimension_numbers = #tpu.dot_dimension_numbers<[1], [0], [0], [1], [0, 0, 1, 1], [], []>} : vector<8x128xf32>, vector<128x128xf32>, vector<8x128xf32> -> vector<8x128xf32>
    %c0_3 = arith.constant 0 : index
    %c0_4 = arith.constant 0 : index
    %3 = vector.load %arg3[%c0_3, %c0_4] : memref<1x128xf32, #tpu.memory_space<vmem>>, vector<1x128xf32>
    %4 = vector.broadcast %3 : vector<1x128xf32> to vector<8x128xf32>
    %5 = arith.addf %2, %4 : vector<8x128xf32>
    %cst_5 = arith.constant 0.000000e+00 : f32
    %6 = vector.broadcast %cst_5 : f32 to vector<8x128xf32>
    %7 = arith.maximumf %5, %6 : vector<8x128xf32>
    %c0_6 = arith.constant 0 : index
    %c0_7 = arith.constant 0 : index
    %8 = vector.load %arg4[%c0_6, %c0_7] : memref<128x128xf32, #tpu.memory_space<vmem>>, vector<128x128xf32>
    %cst_8 = arith.constant dense<0.000000e+00> : vector<8x128xf32>
    %9 = tpu.matmul %7, %8, %cst_8 {dimension_numbers = #tpu.dot_dimension_numbers<[1], [0], [0], [1], [0, 0, 1, 1], [], []>} : vector<8x128xf32>, vector<128x128xf32>, vector<8x128xf32> -> vector<8x128xf32>
    %c0_9 = arith.constant 0 : index
    %c0_10 = arith.constant 0 : index
    %10 = vector.load %arg5[%c0_9, %c0_10] : memref<1x128xf32, #tpu.memory_space<vmem>>, vector<1x128xf32>
    %11 = vector.broadcast %10 : vector<1x128xf32> to vector<8x128xf32>
    %12 = arith.addf %9, %11 : vector<8x128xf32>
    %c0_11 = arith.constant 0 : index
    %c0_12 = arith.constant 0 : index
    %13 = vector.load %arg6[%c0_11, %c0_12] : memref<8x128xf32, #tpu.memory_space<vmem>>, vector<8x128xf32>
    tpu.vector_store %arg6[%c0_11, %c0_12], %12 {strides = array<i32>} : memref<8x128xf32, #tpu.memory_space<vmem>>, vector<8x128xf32>,
    return
  }
  func.func @transform_0(%arg0: i32) -> (i32, i32) {
    %c0_i32 = arith.constant 0 : i32
    %c0_i32_0 = arith.constant 0 : i32
    return %arg0, %c0_i32 : i32, i32
  }
  func.func @transform_1(%arg0: i32) -> (i32, i32) {
    %c0_i32 = arith.constant 0 : i32
    %c0_i32_0 = arith.constant 0 : i32
    %c0_i32_1 = arith.constant 0 : i32
    return %c0_i32, %c0_i32_0 : i32, i32
  }
  func.func @transform_2(%arg0: i32) -> (i32, i32) {
    %c0_i32 = arith.constant 0 : i32
    %c0_i32_0 = arith.constant 0 : i32
    %c0_i32_1 = arith.constant 0 : i32
    return %c0_i32, %c0_i32_0 : i32, i32
  }
  func.func @transform_3(%arg0: i32) -> (i32, i32) {
    %c0_i32 = arith.constant 0 : i32
    %c0_i32_0 = arith.constant 0 : i32
    %c0_i32_1 = arith.constant 0 : i32
    return %c0_i32, %c0_i32_0 : i32, i32
  }
  func.func @transform_4(%arg0: i32) -> (i32, i32) {
    %c0_i32 = arith.constant 0 : i32
    %c0_i32_0 = arith.constant 0 : i32
    %c0_i32_1 = arith.constant 0 : i32
    return %c0_i32, %c0_i32_0 : i32, i32
  }
  func.func @transform_5(%arg0: i32) -> (i32, i32) {
    %c0_i32 = arith.constant 0 : i32
    %c0_i32_0 = arith.constant 0 : i32
    return %arg0, %c0_i32 : i32, i32
  }
}

</mosaic_0001>

<llo_original>
// kernel: tpu_custom_call.1
$region0: #{tpu_custom_call.1}
  #allocation0 [shape = 'u32[]', space=smem, size = 0x4, offset = 0x4, fixed_abs, tag = 'smem constant byte address 0x4 - core index']
  #allocation1 [shape = 'u32[72,128]{1,0:T(1,128)}', space=vmem, size = 0x9000, scoped, tag = 'internal scratch']
  %s0 = inlined_call_operand.hbm [shape: f32[8,128], index: 0, kind: input, shape index: {}]
  %s1 = inlined_call_operand.hbm [shape: f32[128,128], index: 1, kind: input, shape index: {}]
  %s2 = inlined_call_operand.vmem [shape: f32[1,128], index: 2, kind: input, shape index: {}]
  %s3 = inlined_call_operand.hbm [shape: f32[128,128], index: 3, kind: input, shape index: {}]
  %s4 = inlined_call_operand.vmem [shape: f32[1,128], index: 4, kind: input, shape index: {}]
  %s5 = inlined_call_operand.hbm [shape: f32[8,128], index: 5, kind: output, shape index: {}]
  %s6 = sld [smem:[#allocation0]]
  $region42: #{tpu_custom_call.1} parent=0
    _
  %s8 = ssub.s32 1, %s6
  %s9 = scalar_select 0, %s8, %s6
  $region1: #{tpu_custom_call.1} parent=0
    #allocation2 [shape = 'u8[4096]{0}', space=vmem, size = 0x1000, scoped, tag = 'input window, operand 0, single buffered']
    #allocation3 [shape = 's32[1]{0}', space=sflag, size = 0x4, scoped, tag = 'scoped memory for tpu_custom_call.1']
    #allocation4 [shape = 's32[1]{0}', space=sflag, size = 0x4, scoped, tag = 'scoped memory for tpu_custom_call.1']
    #allocation5 [shape = 'u8[65536]{0}', space=vmem, size = 0x10000, scoped, tag = 'input window, operand 1, single buffered']
    #allocation6 [shape = 's32[1]{0}', space=sflag, size = 0x4, scoped, tag = 'scoped memory for tpu_custom_call.1']
    #allocation7 [shape = 'u8[65536]{0}', space=vmem, size = 0x10000, scoped, tag = 'input window, operand 3, single buffered']
    #allocation8 [shape = 'u8[4096]{0}', space=vmem, size = 0x1000, scoped, tag = 'output window, operand 0, single buffered']
    %10 = vsyncpa [#allocation3], 0
    %11 = vsyncpa [#allocation6], 0
    %12 = vsyncpa [#allocation4], 0
    // Predicated region
    $region2: #{tpu_custom_call.1} parent=1 // pred_check
      _
    $region3: #{tpu_custom_call.1} parent=1 // pred_check_branch
      %14 = sbr.rel (0) target = $region5
    $region4: #{tpu_custom_call.1} parent=1 // pred_region
      %16 = vsyncadd [#allocation3], 0
      %s18 = sshll.u32 %s0, 4
      %s19 = int_to_ptr.hbm [resolvable:$true] %s18
      %s20 = sshll.u32 [#allocation2], 4
      %s21 = int_to_ptr.vmem [resolvable:$true] %s20
      %23 = dma.hbm_to_vmem [thread:$0]  %s19, 128, %s21, [#allocation3]
    $region5: #{tpu_custom_call.1} parent=1 // pred_fallthru
      _
    // Predicated region
    $region6: #{tpu_custom_call.1} parent=1 // pred_check
      _
    $region7: #{tpu_custom_call.1} parent=1 // pred_check_branch
      %25 = sbr.rel (0) target = $region9
    $region8: #{tpu_custom_call.1} parent=1 // pred_region
      %27 = vsyncadd [#allocation6], 0
      %s28 = sshll.u32 %s1, 4
      %s29 = int_to_ptr.hbm [resolvable:$true] %s28
      %s30 = sshll.u32 [#allocation5], 4
      %s31 = int_to_ptr.vmem [resolvable:$true] %s30
      %36 = dma.hbm_to_vmem [thread:$0]  %s29, 2048, %s31, [#allocation6], 128, 128, 8
    $region9: #{tpu_custom_call.1} parent=1 // pred_fallthru
      _
    // Predicated region
    $region10: #{tpu_custom_call.1} parent=1 // pred_check
      _
    $region11: #{tpu_custom_call.1} parent=1 // pred_check_branch
      %38 = sbr.rel (0) target = $region13
    $region12: #{tpu_custom_call.1} parent=1 // pred_region
      _
    $region13: #{tpu_custom_call.1} parent=1 // pred_fallthru
      _
    // Predicated region
    $region14: #{tpu_custom_call.1} parent=1 // pred_check
      _
    $region15: #{tpu_custom_call.1} parent=1 // pred_check_branch
      %40 = sbr.rel (0) target = $region17
    $region16: #{tpu_custom_call.1} parent=1 // pred_region
      %42 = vsyncadd [#allocation6], 0
      %s43 = sshll.u32 %s3, 4
      %s44 = int_to_ptr.hbm [resolvable:$true] %s43
      %s45 = sshll.u32 [#allocation7], 4
      %s46 = int_to_ptr.vmem [resolvable:$true] %s45
      %51 = dma.hbm_to_vmem [thread:$0]  %s44, 2048, %s46, [#allocation6], 128, 128, 8
    $region17: #{tpu_custom_call.1} parent=1 // pred_fallthru
      _
    // Predicated region
    $region18: #{tpu_custom_call.1} parent=1 // pred_check
      _
    $region19: #{tpu_custom_call.1} parent=1 // pred_check_branch
      %53 = sbr.rel (0) target = $region21
    $region20: #{tpu_custom_call.1} parent=1 // pred_region
      _
    $region21: #{tpu_custom_call.1} parent=1 // pred_fallthru
      _
    // Predicated region
    $region22: #{tpu_custom_call.1} parent=1 // pred_check
      _
    $region23: #{tpu_custom_call.1} parent=1 // pred_check_branch
      %55 = sbr.rel (0) target = $region25
    $region24: #{tpu_custom_call.1} parent=1 // pred_region
      %57 = dma.done [#allocation3], 128
    $region25: #{tpu_custom_call.1} parent=1 // pred_fallthru
      _
    // Predicated region
    $region26: #{tpu_custom_call.1} parent=1 // pred_check
      _
    $region27: #{tpu_custom_call.1} parent=1 // pred_check_branch
      %59 = sbr.rel (0) target = $region29
    $region28: #{tpu_custom_call.1} parent=1 // pred_region
      %61 = dma.done [#allocation6], 2048
    $region29: #{tpu_custom_call.1} parent=1 // pred_fallthru
      _
    // Predicated region
    $region30: #{tpu_custom_call.1} parent=1 // pred_check
      _
    $region31: #{tpu_custom_call.1} parent=1 // pred_check_branch
      %63 = sbr.rel (0) target = $region33
    $region32: #{tpu_custom_call.1} parent=1 // pred_region
      %65 = dma.done [#allocation6], 2048
    $region33: #{tpu_custom_call.1} parent=1 // pred_fallthru
      _
    %v66 = vld [vmem:[#allocation2] sm:$0xff]
    %v67 = vld [vmem:[#allocation5] sm:$0xff]
    %v68 = vld [vmem:[#allocation5 + $0x8] sm:$0xff]
    %v69 = vld [vmem:[#allocation5 + $0x10] sm:$0xff]
    %v70 = vld [vmem:[#allocation5 + $0x18] sm:$0xff]
    %v71 = vld [vmem:[#allocation5 + $0x20] sm:$0xff]
    %v72 = vld [vmem:[#allocation5 + $0x28] sm:$0xff]
    %v73 = vld [vmem:[#allocation5 + $0x30] sm:$0xff]
    %v74 = vld [vmem:[#allocation5 + $0x38] sm:$0xff]
    %v75 = vld [vmem:[#allocation5 + $0x40] sm:$0xff]
    %v76 = vld [vmem:[#allocation5 + $0x48] sm:$0xff]
    %v77 = vld [vmem:[#allocation5 + $0x50] sm:$0xff]
    %v78 = vld [vmem:[#allocation5 + $0x58] sm:$0xff]
    %v79 = vld [vmem:[#allocation5 + $0x60] sm:$0xff]
    %v80 = vld [vmem:[#allocation5 + $0x68] sm:$0xff]
    %v81 = vld [vmem:[#allocation5 + $0x70] sm:$0xff]
    %v82 = vld [vmem:[#allocation5 + $0x78] sm:$0xff]
    %v83 = vld [vmem:[%s2] sm:$0x1]
    %v85 = vperm.slane %v83, 0
    %87 = vmatpush.msra.mxu0 %v82
    %88 = vmatpush.msra.mxu0 %v81
    %89 = vmatpush.msra.mxu0 %v80
    %90 = vmatpush.msra.mxu0 %v79
    %91 = vmatpush.msra.mxu0 %v78
    %92 = vmatpush.msra.mxu0 %v77
    %93 = vmatpush.msra.mxu0 %v76
    %94 = vmatpush.msra.mxu0 %v75
    %95 = vmatpush.msra.mxu0 %v74
    %96 = vmatpush.msra.mxu0 %v73
    %97 = vmatpush.msra.mxu0 %v72
    %98 = vmatpush.msra.mxu0 %v71
    %99 = vmatpush.msra.mxu0 %v70
    %100 = vmatpush.msra.mxu0 %v69
    %101 = vmatpush.msra.mxu0 %v68
    %102 = vmatpush.msra.mxu0 %v67
    %103 = vmatmul.f32.gmra.mxu0 %v66
    %v104 = vpop.f32.mrf.mxu0
    %v105 = vadd.f32 %v85, %v104
    %106 = vdwg.mxu0
    %v107 = vmax.f32 %v105, 0.0
    %v108 = vld [vmem:[#allocation7] sm:$0xff]
    %v109 = vld [vmem:[#allocation7 + $0x8] sm:$0xff]
    %v110 = vld [vmem:[#allocation7 + $0x10] sm:$0xff]
    %v111 = vld [vmem:[#allocation7 + $0x18] sm:$0xff]
    %v112 = vld [vmem:[#allocation7 + $0x20] sm:$0xff]
    %v113 = vld [vmem:[#allocation7 + $0x28] sm:$0xff]
    %v114 = vld [vmem:[#allocation7 + $0x30] sm:$0xff]
    %v115 = vld [vmem:[#allocation7 + $0x38] sm:$0xff]
    %v116 = vld [vmem:[#allocation7 + $0x40] sm:$0xff]
    %v117 = vld [vmem:[#allocation7 + $0x48] sm:$0xff]
    %v118 = vld [vmem:[#allocation7 + $0x50] sm:$0xff]
    %v119 = vld [vmem:[#allocation7 + $0x58] sm:$0xff]
    %v120 = vld [vmem:[#allocation7 + $0x60] sm:$0xff]
    %v121 = vld [vmem:[#allocation7 + $0x68] sm:$0xff]
    %v122 = vld [vmem:[#allocation7 + $0x70] sm:$0xff]
    %v123 = vld [vmem:[#allocation7 + $0x78] sm:$0xff]
    %v124 = vld [vmem:[%s4] sm:$0x1]
    %v126 = vperm.slane %v124, 0
    %128 = vmatpush.msra.mxu0 %v123
    %129 = vmatpush.msra.mxu0 %v122
    %130 = vmatpush.msra.mxu0 %v121
    %131 = vmatpush.msra.mxu0 %v120
    %132 = vmatpush.msra.mxu0 %v119
    %133 = vmatpush.msra.mxu0 %v118
    %134 = vmatpush.msra.mxu0 %v117
    %135 = vmatpush.msra.mxu0 %v116
    %136 = vmatpush.msra.mxu0 %v115
    %137 = vmatpush.msra.mxu0 %v114
    %138 = vmatpush.msra.mxu0 %v113
    %139 = vmatpush.msra.mxu0 %v112
    %140 = vmatpush.msra.mxu0 %v111
    %141 = vmatpush.msra.mxu0 %v110
    %142 = vmatpush.msra.mxu0 %v109
    %143 = vmatpush.msra.mxu0 %v108
    %144 = vmatmul.f32.gmra.mxu0 %v107
    %v145 = vpop.f32.mrf.mxu0
    %v146 = vadd.f32 %v126, %v145
    %147 = vdwg.mxu0
    %148 = vst [vmem:[#allocation8] sm:$0xff] %v146
    // Predicated region
    $region34: #{tpu_custom_call.1} parent=1 // pred_check
      _
    $region35: #{tpu_custom_call.1} parent=1 // pred_check_branch
      %150 = sbr.rel (0) target = $region37
    $region36: #{tpu_custom_call.1} parent=1 // pred_region
      %152 = vsyncadd [#allocation4], 0
      %s154 = sshll.u32 [#allocation8], 4
      %s155 = int_to_ptr.vmem [resolvable:$true] %s154
      %s156 = sshll.u32 %s5, 4
      %s157 = int_to_ptr.hbm [resolvable:$true] %s156
      %159 = dma.vmem_to_hbm [thread:$0]  %s155, 128, %s157, [#allocation4]
    $region37: #{tpu_custom_call.1} parent=1 // pred_fallthru
      _
    // Predicated region
    $region38: #{tpu_custom_call.1} parent=1 // pred_check
      _
    $region39: #{tpu_custom_call.1} parent=1 // pred_check_branch
      %161 = sbr.rel (0) target = $region41
    $region40: #{tpu_custom_call.1} parent=1 // pred_region
      %163 = dma.done [#allocation4], 128
    $region41: #{tpu_custom_call.1} parent=1 // pred_fallthru
      _
    %164 = vsyncpa [#allocation3], 1
    %165 = vsyncpa [#allocation6], 1
    %166 = vsyncpa [#allocation4], 1

</llo_original>
